<compile_context>
chip_gen: v6e
topology: v6e:2x2x1
jax: 0.10.0
libtpu: 0.0.40
codegen_flags: <defaults>
</compile_context>

<pallas_src>
import functools

import jax
import jax.numpy as jnp
from jax.experimental import pallas as pl
from jax.experimental.pallas import tpu as pltpu


# ----------------------------------------------------------------------------
# Fused Pallas kernel: whole MLP chain  y = LN(...L2(L1(x))...)
# refs = (x_ref, w1, b1, w2, b2, ..., wN, bN, o_ref)
# ----------------------------------------------------------------------------
def _fused_mlp_kernel(*refs, acts):
    x_ref = refs[0]
    o_ref = refs[-1]
    wb_refs = refs[1:-1]

    h = x_ref[...].astype(jnp.float32)
    for i, act in enumerate(acts):
        w = wb_refs[2 * i][...]
        b = wb_refs[2 * i + 1][...]          # (1, Dout) -> broadcasts over batch
        # bf16 MXU fast path if weights are stored in bf16; accumulate in f32.
        lhs = h.astype(jnp.bfloat16) if w.dtype == jnp.bfloat16 else h
        h = jnp.dot(lhs, w, preferred_element_type=jnp.float32)
        h = h + b.astype(jnp.float32)        # epilogue in f32 (v5e-safe: VPU f32)
        if act == "relu":
            h = jnp.maximum(h, 0.0)
        elif act == "leaky_relu":
            h = jnp.where(h >= 0.0, h, 0.01 * h)
        # act == "none": identity
    o_ref[...] = h.astype(o_ref.dtype)


def fused_mlp(x, layers, acts, *, block_b=128):
    """Run a chain of Linear(+activation) layers in a single Pallas kernel.

    x      : (B, Din) float32
    layers : list of (w, b) with w:(Din_i, Dout_i) and b:(1, Dout_i)
    acts   : list of activation names, one per layer ("relu"/"leaky_relu"/"none")
    """
    assert len(layers) == len(acts)
    B, Din = x.shape
    Dout = layers[-1][0].shape[1]

    # Batch tiling: one block for small / ragged batches, block_b-row tiles
    # (sublane-aligned) otherwise.
    if B <= block_b or B % block_b != 0:
        bb = B
    else:
        bb = block_b
    grid = (B // bb,)

    in_specs = [pl.BlockSpec((bb, Din), lambda i: (i, 0))]
    flat_args = [x]
    for (w, b) in layers:
        din, dout = w.shape
        # Constant index_maps -> weights/biases stay VMEM-resident across
        # batch tiles (no per-step re-fetch).
        in_specs.append(pl.BlockSpec((din, dout), lambda i: (0, 0)))
        in_specs.append(pl.BlockSpec((1, dout), lambda i: (0, 0)))
        flat_args.append(w)
        flat_args.append(b)

    out_spec = pl.BlockSpec((bb, Dout), lambda i: (i, 0))
    kernel = functools.partial(_fused_mlp_kernel, acts=tuple(acts))

    return pl.pallas_call(
        kernel,
        out_shape=jax.ShapeDtypeStruct((B, Dout), x.dtype),
        grid=grid,
        in_specs=in_specs,
        out_specs=out_spec,
        compiler_params=pltpu.CompilerParams(
            # Batch tiles are independent -> "parallel" lets v7x's two
            # TensorCores split them (harmless on single-TC v5e/v6e).
            dimension_semantics=("parallel",),
        ),
    )(*flat_args)


# ----------------------------------------------------------------------------
# Deterministic parameter construction (synthetic, no checkpoint loading)
# ----------------------------------------------------------------------------
def _init_linear(key, din, dout, dtype=jnp.float32):
    kw, kb = jax.random.split(key)
    # PyTorch-style uniform(-1/sqrt(din), 1/sqrt(din)) init, deterministic.
    bound = 1.0 / jnp.sqrt(jnp.float32(din))
    w = jax.random.uniform(kw, (din, dout), jnp.float32, -bound, bound)
    b = jax.random.uniform(kb, (1, dout), jnp.float32, -bound, bound)
    return w.astype(dtype), b.astype(jnp.float32)


def make_params(key, in_dim=256, hidden=128, latent=64, out_dim=256,
                interface_layers=1, weight_dtype=jnp.float32):
    keys = jax.random.split(key, 8)
    params = {
        # offshore encoder
        "enc1": _init_linear(keys[0], in_dim, hidden, weight_dtype),
        "enc2": _init_linear(keys[1], hidden, latent, weight_dtype),
        # onshore decoder
        "dec1": _init_linear(keys[4], latent, hidden, weight_dtype),
        "dec2": _init_linear(keys[5], hidden, out_dim, weight_dtype),
        "interface_layers": interface_layers,
    }
    # connect (interface) layers -- exactly as in the PyTorch __init__
    if interface_layers == 1:
        params["conn1"] = _init_linear(keys[2], latent, latent, weight_dtype)
    elif interface_layers == 2:
        params["conn1"] = _init_linear(keys[2], latent, latent, weight_dtype)
        params["conn2"] = _init_linear(keys[3], latent, latent, weight_dtype)
    return params


def _build_layer_list(params):
    layers = [params["enc1"], params["enc2"]]
    acts = ["relu", "relu"]
    if params["interface_layers"] == 1:
        layers.append(params["conn1"])
        acts.append("relu")
    else:
        layers += [params["conn1"], params["conn2"]]
        acts += ["leaky_relu", "leaky_relu"]
    layers += [params["dec1"], params["dec2"]]
    acts += ["relu", "none"]
    return layers, acts


# ----------------------------------------------------------------------------
# Forward pass of Autoencoder_coupled (dz is unused, as in the reference)
# ----------------------------------------------------------------------------
def autoencoder_coupled_forward(params, x, dz):
    del dz  # unused in the PyTorch forward as well
    layers, acts = _build_layer_list(params)
    return fused_mlp(x, layers, acts)


# Pure-JAX reference for a correctness check (same math, no Pallas).
def _reference_forward(params, x):
    layers, acts = _build_layer_list(params)
    h = x.astype(jnp.float32)
    for (w, b), act in zip(layers, acts):
        h = h @ w.astype(jnp.float32) + b
        if act == "relu":
            h = jnp.maximum(h, 0.0)
        elif act == "leaky_relu":
            h = jnp.where(h >= 0.0, h, 0.01 * h)
    return h.astype(x.dtype)


if __name__ == "__main__":
    key = jax.random.PRNGKey(0)
    k_params, k_x, k_dz = jax.random.split(key, 3)

    B, IN_DIM, OUT_DIM = 2, 256, 256
    params = make_params(k_params, in_dim=IN_DIM, out_dim=OUT_DIM,
                         interface_layers=1)

    x = jax.random.normal(k_x, (B, IN_DIM), jnp.float32)
    dz = jax.random.normal(k_dz, (B, IN_DIM), jnp.float32)  # unused by forward

    out = autoencoder_coupled_forward(params, x, dz)
    out = jax.block_until_ready(out)
    assert out.shape == (B, OUT_DIM), out.shape
    assert out.dtype == jnp.float32

    ref = jax.block_until_ready(_reference_forward(params, x))
    assert jnp.allclose(out, ref, atol=1e-4, rtol=1e-4), \
        float(jnp.max(jnp.abs(out - ref)))

    print("KERNEL_OK")
</pallas_src>

<mosaic_0001>
module attributes {stable_mosaic.version = 11 : i64} {
  func.func @_fused_mlp_kernel(%arg0: i32, %arg1: memref<2x256xf32, #tpu.memory_space<vmem>>, %arg2: memref<256x128xf32, #tpu.memory_space<vmem>>, %arg3: memref<1x128xf32, #tpu.memory_space<vmem>>, %arg4: memref<128x64xf32, #tpu.memory_space<vmem>>, %arg5: memref<1x64xf32, #tpu.memory_space<vmem>>, %arg6: memref<64x64xf32, #tpu.memory_space<vmem>>, %arg7: memref<1x64xf32, #tpu.memory_space<vmem>>, %arg8: memref<64x128xf32, #tpu.memory_space<vmem>>, %arg9: memref<1x128xf32, #tpu.memory_space<vmem>>, %arg10: memref<128x256xf32, #tpu.memory_space<vmem>>, %arg11: memref<1x256xf32, #tpu.memory_space<vmem>>, %arg12: memref<2x256xf32, #tpu.memory_space<vmem>>) attributes {dimension_semantics = [#tpu.dimension_semantics<parallel>], iteration_bounds = array<i64: 1>, scalar_prefetch = 0 : i64, scratch_operands = 0 : i64, tpu.core_type = #tpu.core_type<tc>, window_params = [{transform_indices = @transform_0, window_bounds = array<i64: 2, 256>}, {pipeline_mode = #tpu.pipeline_mode<synchronous>, transform_indices = @transform_1, window_bounds = array<i64: 256, 128>}, {pipeline_mode = #tpu.pipeline_mode<synchronous>, transform_indices = @transform_2, window_bounds = array<i64: 1, 128>}, {pipeline_mode = #tpu.pipeline_mode<synchronous>, transform_indices = @transform_3, window_bounds = array<i64: 128, 64>}, {pipeline_mode = #tpu.pipeline_mode<synchronous>, transform_indices = @transform_4, window_bounds = array<i64: 1, 64>}, {pipeline_mode = #tpu.pipeline_mode<synchronous>, transform_indices = @transform_5, window_bounds = array<i64: 64, 64>}, {pipeline_mode = #tpu.pipeline_mode<synchronous>, transform_indices = @transform_6, window_bounds = array<i64: 1, 64>}, {pipeline_mode = #tpu.pipeline_mode<synchronous>, transform_indices = @transform_7, window_bounds = array<i64: 64, 128>}, {pipeline_mode = #tpu.pipeline_mode<synchronous>, transform_indices = @transform_8, window_bounds = array<i64: 1, 128>}, {pipeline_mode = #tpu.pipeline_mode<synchronous>, transform_indices = @transform_9, window_bounds = array<i64: 128, 256>}, {pipeline_mode = #tpu.pipeline_mode<synchronous>, transform_indices = @transform_10, window_bounds = array<i64: 1, 256>}, {transform_indices = @transform_11, window_bounds = array<i64: 2, 256>}]} {
    %c0 = arith.constant 0 : index
    %c0_0 = arith.constant 0 : index
    %0 = vector.load %arg1[%c0, %c0_0] : memref<2x256xf32, #tpu.memory_space<vmem>>, vector<2x256xf32>
    %c0_1 = arith.constant 0 : index
    %c0_2 = arith.constant 0 : index
    %1 = vector.load %arg2[%c0_1, %c0_2] : memref<256x128xf32, #tpu.memory_space<vmem>>, vector<256x128xf32>
    %c0_3 = arith.constant 0 : index
    %c0_4 = arith.constant 0 : index
    %2 = vector.load %arg3[%c0_3, %c0_4] : memref<1x128xf32, #tpu.memory_space<vmem>>, vector<1x128xf32>
    %cst = arith.constant dense<0.000000e+00> : vector<2x128xf32>
    %3 = tpu.matmul %0, %1, %cst {dimension_numbers = #tpu.dot_dimension_numbers<[1], [0], [0], [1], [0, 0, 1, 1], [], []>} : vector<2x256xf32>, vector<256x128xf32>, vector<2x128xf32> -> vector<2x128xf32>
    %4 = vector.broadcast %2 : vector<1x128xf32> to vector<2x128xf32>
    %5 = arith.addf %3, %4 : vector<2x128xf32>
    %cst_5 = arith.constant 0.000000e+00 : f32
    %6 = vector.broadcast %cst_5 : f32 to vector<2x128xf32>
    %7 = arith.maximumf %5, %6 : vector<2x128xf32>
    %c0_6 = arith.constant 0 : index
    %c0_7 = arith.constant 0 : index
    %8 = vector.load %arg4[%c0_6, %c0_7] : memref<128x64xf32, #tpu.memory_space<vmem>>, vector<128x64xf32>
    %c0_8 = arith.constant 0 : index
    %c0_9 = arith.constant 0 : index
    %9 = vector.load %arg5[%c0_8, %c0_9] : memref<1x64xf32, #tpu.memory_space<vmem>>, vector<1x64xf32>
    %cst_10 = arith.constant dense<0.000000e+00> : vector<2x64xf32>
    %10 = tpu.matmul %7, %8, %cst_10 {dimension_numbers = #tpu.dot_dimension_numbers<[1], [0], [0], [1], [0, 0, 1, 1], [], []>} : vector<2x128xf32>, vector<128x64xf32>, vector<2x64xf32> -> vector<2x64xf32>
    %11 = vector.broadcast %9 : vector<1x64xf32> to vector<2x64xf32>
    %12 = arith.addf %10, %11 : vector<2x64xf32>
    %cst_11 = arith.constant 0.000000e+00 : f32
    %13 = vector.broadcast %cst_11 : f32 to vector<2x64xf32>
    %14 = arith.maximumf %12, %13 : vector<2x64xf32>
    %c0_12 = arith.constant 0 : index
    %c0_13 = arith.constant 0 : index
    %15 = vector.load %arg6[%c0_12, %c0_13] : memref<64x64xf32, #tpu.memory_space<vmem>>, vector<64x64xf32>
    %c0_14 = arith.constant 0 : index
    %c0_15 = arith.constant 0 : index
    %16 = vector.load %arg7[%c0_14, %c0_15] : memref<1x64xf32, #tpu.memory_space<vmem>>, vector<1x64xf32>
    %cst_16 = arith.constant dense<0.000000e+00> : vector<2x64xf32>
    %17 = tpu.matmul %14, %15, %cst_16 {dimension_numbers = #tpu.dot_dimension_numbers<[1], [0], [0], [1], [0, 0, 1, 1], [], []>} : vector<2x64xf32>, vector<64x64xf32>, vector<2x64xf32> -> vector<2x64xf32>
    %18 = vector.broadcast %16 : vector<1x64xf32> to vector<2x64xf32>
    %19 = arith.addf %17, %18 : vector<2x64xf32>
    %cst_17 = arith.constant 0.000000e+00 : f32
    %20 = vector.broadcast %cst_17 : f32 to vector<2x64xf32>
    %21 = arith.maximumf %19, %20 : vector<2x64xf32>
    %c0_18 = arith.constant 0 : index
    %c0_19 = arith.constant 0 : index
    %22 = vector.load %arg8[%c0_18, %c0_19] : memref<64x128xf32, #tpu.memory_space<vmem>>, vector<64x128xf32>
    %c0_20 = arith.constant 0 : index
    %c0_21 = arith.constant 0 : index
    %23 = vector.load %arg9[%c0_20, %c0_21] : memref<1x128xf32, #tpu.memory_space<vmem>>, vector<1x128xf32>
    %cst_22 = arith.constant dense<0.000000e+00> : vector<2x128xf32>
    %24 = tpu.matmul %21, %22, %cst_22 {dimension_numbers = #tpu.dot_dimension_numbers<[1], [0], [0], [1], [0, 0, 1, 1], [], []>} : vector<2x64xf32>, vector<64x128xf32>, vector<2x128xf32> -> vector<2x128xf32>
    %25 = vector.broadcast %23 : vector<1x128xf32> to vector<2x128xf32>
    %26 = arith.addf %24, %25 : vector<2x128xf32>
    %cst_23 = arith.constant 0.000000e+00 : f32
    %27 = vector.broadcast %cst_23 : f32 to vector<2x128xf32>
    %28 = arith.maximumf %26, %27 : vector<2x128xf32>
    %c0_24 = arith.constant 0 : index
    %c0_25 = arith.constant 0 : index
    %29 = vector.load %arg10[%c0_24, %c0_25] : memref<128x256xf32, #tpu.memory_space<vmem>>, vector<128x256xf32>
    %c0_26 = arith.constant 0 : index
    %c0_27 = arith.constant 0 : index
    %30 = vector.load %arg11[%c0_26, %c0_27] : memref<1x256xf32, #tpu.memory_space<vmem>>, vector<1x256xf32>
    %cst_28 = arith.constant dense<0.000000e+00> : vector<2x256xf32>
    %31 = tpu.matmul %28, %29, %cst_28 {dimension_numbers = #tpu.dot_dimension_numbers<[1], [0], [0], [1], [0, 0, 1, 1], [], []>} : vector<2x128xf32>, vector<128x256xf32>, vector<2x256xf32> -> vector<2x256xf32>
    %32 = vector.broadcast %30 : vector<1x256xf32> to vector<2x256xf32>
    %33 = arith.addf %31, %32 : vector<2x256xf32>
    %c0_29 = arith.constant 0 : index
    %c0_30 = arith.constant 0 : index
    %34 = vector.load %arg12[%c0_29, %c0_30] : memref<2x256xf32, #tpu.memory_space<vmem>>, vector<2x256xf32>
    tpu.vector_store %arg12[%c0_29, %c0_30], %33 {strides = array<i32>} : memref<2x256xf32, #tpu.memory_space<vmem>>, vector<2x256xf32>,
    return
  }
  func.func @transform_0(%arg0: i32) -> (i32, i32) {
    %c0_i32 = arith.constant 0 : i32
    %c0_i32_0 = arith.constant 0 : i32
    return %arg0, %c0_i32 : i32, i32
  }
  func.func @transform_1(%arg0: i32) -> (i32, i32) {
    %c0_i32 = arith.constant 0 : i32
    %c0_i32_0 = arith.constant 0 : i32
    %c0_i32_1 = arith.constant 0 : i32
    return %c0_i32, %c0_i32_0 : i32, i32
  }
  func.func @transform_2(%arg0: i32) -> (i32, i32) {
    %c0_i32 = arith.constant 0 : i32
    %c0_i32_0 = arith.constant 0 : i32
    %c0_i32_1 = arith.constant 0 : i32
    return %c0_i32, %c0_i32_0 : i32, i32
  }
  func.func @transform_3(%arg0: i32) -> (i32, i32) {
    %c0_i32 = arith.constant 0 : i32
    %c0_i32_0 = arith.constant 0 : i32
    %c0_i32_1 = arith.constant 0 : i32
    return %c0_i32, %c0_i32_0 : i32, i32
  }
  func.func @transform_4(%arg0: i32) -> (i32, i32) {
    %c0_i32 = arith.constant 0 : i32
    %c0_i32_0 = arith.constant 0 : i32
    %c0_i32_1 = arith.constant 0 : i32
    return %c0_i32, %c0_i32_0 : i32, i32
  }
  func.func @transform_5(%arg0: i32) -> (i32, i32) {
    %c0_i32 = arith.constant 0 : i32
    %c0_i32_0 = arith.constant 0 : i32
    %c0_i32_1 = arith.constant 0 : i32
    return %c0_i32, %c0_i32_0 : i32, i32
  }
  func.func @transform_6(%arg0: i32) -> (i32, i32) {
    %c0_i32 = arith.constant 0 : i32
    %c0_i32_0 = arith.constant 0 : i32
    %c0_i32_1 = arith.constant 0 : i32
    return %c0_i32, %c0_i32_0 : i32, i32
  }
  func.func @transform_7(%arg0: i32) -> (i32, i32) {
    %c0_i32 = arith.constant 0 : i32
    %c0_i32_0 = arith.constant 0 : i32
    %c0_i32_1 = arith.constant 0 : i32
    return %c0_i32, %c0_i32_0 : i32, i32
  }
  func.func @transform_8(%arg0: i32) -> (i32, i32) {
    %c0_i32 = arith.constant 0 : i32
    %c0_i32_0 = arith.constant 0 : i32
    %c0_i32_1 = arith.constant 0 : i32
    return %c0_i32, %c0_i32_0 : i32, i32
  }
  func.func @transform_9(%arg0: i32) -> (i32, i32) {
    %c0_i32 = arith.constant 0 : i32
    %c0_i32_0 = arith.constant 0 : i32
    %c0_i32_1 = arith.constant 0 : i32
    return %c0_i32, %c0_i32_0 : i32, i32
  }
  func.func @transform_10(%arg0: i32) -> (i32, i32) {
    %c0_i32 = arith.constant 0 : i32
    %c0_i32_0 = arith.constant 0 : i32
    %c0_i32_1 = arith.constant 0 : i32
    return %c0_i32, %c0_i32_0 : i32, i32
  }
  func.func @transform_11(%arg0: i32) -> (i32, i32) {
    %c0_i32 = arith.constant 0 : i32
    %c0_i32_0 = arith.constant 0 : i32
    return %arg0, %c0_i32 : i32, i32
  }
}

</mosaic_0001>

<llo_original>
// kernel: tpu_custom_call.1
$region0: #{tpu_custom_call.1}
  #allocation0 [shape = 'u32[]', space=smem, size = 0x4, offset = 0x4, fixed_abs, tag = 'smem constant byte address 0x4 - core index']
  #allocation1 [shape = 'u32[144,128]{1,0:T(1,128)}', space=vmem, size = 0x12000, scoped, tag = 'internal scratch']
  %s0 = inlined_call_operand.vmem [shape: f32[2,256], index: 0, kind: input, shape index: {}]
  %s1 = inlined_call_operand.hbm [shape: f32[256,128], index: 1, kind: input, shape index: {}]
  %s2 = inlined_call_operand.vmem [shape: f32[1,128], index: 2, kind: input, shape index: {}]
  %s3 = inlined_call_operand.vmem [shape: f32[128,64], index: 3, kind: input, shape index: {}]
  %s4 = inlined_call_operand.vmem [shape: f32[1,64], index: 4, kind: input, shape index: {}]
  %s5 = inlined_call_operand.vmem [shape: f32[64,64], index: 5, kind: input, shape index: {}]
  %s6 = inlined_call_operand.vmem [shape: f32[1,64], index: 6, kind: input, shape index: {}]
  %s7 = inlined_call_operand.vmem [shape: f32[64,128], index: 7, kind: input, shape index: {}]
  %s8 = inlined_call_operand.vmem [shape: f32[1,128], index: 8, kind: input, shape index: {}]
  %s9 = inlined_call_operand.hbm [shape: f32[128,256], index: 9, kind: input, shape index: {}]
  %s10 = inlined_call_operand.vmem [shape: f32[1,256], index: 10, kind: input, shape index: {}]
  %s11 = inlined_call_operand.hbm [shape: f32[2,256], index: 11, kind: output, shape index: {}]
  %s12 = sld [smem:[#allocation0]]
  $region62: #{tpu_custom_call.1} parent=0
    _
  %s14 = ssub.s32 1, %s12
  %s15 = scalar_select 0, %s14, %s12
  $region1: #{tpu_custom_call.1} parent=0
    #allocation2 [shape = 'u8[131072]{0}', space=vmem, size = 0x20000, scoped, tag = 'input window, operand 1, single buffered']
    #allocation3 [shape = 's32[1]{0}', space=sflag, size = 0x4, scoped, tag = 'scoped memory for tpu_custom_call.1']
    #allocation4 [shape = 's32[1]{0}', space=sflag, size = 0x4, scoped, tag = 'scoped memory for tpu_custom_call.1']
    #allocation5 [shape = 'u8[131072]{0}', space=vmem, size = 0x20000, scoped, tag = 'input window, operand 9, single buffered']
    #allocation6 [shape = 's32[1]{0}', space=sflag, size = 0x4, scoped, tag = 'scoped memory for tpu_custom_call.1']
    #allocation7 [shape = 'u8[2048]{0}', space=vmem, size = 0x800, scoped, tag = 'output window, operand 0, single buffered']
    %16 = vsyncpa [#allocation3], 0
    %17 = vsyncpa [#allocation6], 0
    %18 = vsyncpa [#allocation4], 0
    // Predicated region
    $region2: #{tpu_custom_call.1} parent=1 // pred_check
      _
    $region3: #{tpu_custom_call.1} parent=1 // pred_check_branch
      %20 = sbr.rel (0) target = $region5
    $region4: #{tpu_custom_call.1} parent=1 // pred_region
      _
    $region5: #{tpu_custom_call.1} parent=1 // pred_fallthru
      _
    // Predicated region
    $region6: #{tpu_custom_call.1} parent=1 // pred_check
      _
    $region7: #{tpu_custom_call.1} parent=1 // pred_check_branch
      %22 = sbr.rel (0) target = $region9
    $region8: #{tpu_custom_call.1} parent=1 // pred_region
      %s24 = ssub.s32 4096, 4096
      %25 = vsyncadd [#allocation3], %s24
      %s26 = sshll.u32 [#allocation2], 4
      %s27 = int_to_ptr.vmem [resolvable:$true] %s26
      %32 = dma.hbm_to_vmem [thread:$0]  %s1, 4096, %s27, [#allocation3], 128, 128, 8
    $region9: #{tpu_custom_call.1} parent=1 // pred_fallthru
      _
    // Predicated region
    $region10: #{tpu_custom_call.1} parent=1 // pred_check
      _
    $region11: #{tpu_custom_call.1} parent=1 // pred_check_branch
      %34 = sbr.rel (0) target = $region13
    $region12: #{tpu_custom_call.1} parent=1 // pred_region
      _
    $region13: #{tpu_custom_call.1} parent=1 // pred_fallthru
      _
    // Predicated region
    $region14: #{tpu_custom_call.1} parent=1 // pred_check
      _
    $region15: #{tpu_custom_call.1} parent=1 // pred_check_branch
      %36 = sbr.rel (0) target = $region17
    $region16: #{tpu_custom_call.1} parent=1 // pred_region
      _
    $region17: #{tpu_custom_call.1} parent=1 // pred_fallthru
      _
    // Predicated region
    $region18: #{tpu_custom_call.1} parent=1 // pred_check
      _
    $region19: #{tpu_custom_call.1} parent=1 // pred_check_branch
      %38 = sbr.rel (0) target = $region21
    $region20: #{tpu_custom_call.1} parent=1 // pred_region
      _
    $region21: #{tpu_custom_call.1} parent=1 // pred_fallthru
      _
    // Predicated region
    $region22: #{tpu_custom_call.1} parent=1 // pred_check
      _
    $region23: #{tpu_custom_call.1} parent=1 // pred_check_branch
      %40 = sbr.rel (0) target = $region25
    $region24: #{tpu_custom_call.1} parent=1 // pred_region
      _
    $region25: #{tpu_custom_call.1} parent=1 // pred_fallthru
      _
    // Predicated region
    $region26: #{tpu_custom_call.1} parent=1 // pred_check
      _
    $region27: #{tpu_custom_call.1} parent=1 // pred_check_branch
      %42 = sbr.rel (0) target = $region29
    $region28: #{tpu_custom_call.1} parent=1 // pred_region
      _
    $region29: #{tpu_custom_call.1} parent=1 // pred_fallthru
      _
    // Predicated region
    $region30: #{tpu_custom_call.1} parent=1 // pred_check
      _
    $region31: #{tpu_custom_call.1} parent=1 // pred_check_branch
      %44 = sbr.rel (0) target = $region33
    $region32: #{tpu_custom_call.1} parent=1 // pred_region
      _
    $region33: #{tpu_custom_call.1} parent=1 // pred_fallthru
      _
    // Predicated region
    $region34: #{tpu_custom_call.1} parent=1 // pred_check
      _
    $region35: #{tpu_custom_call.1} parent=1 // pred_check_branch
      %46 = sbr.rel (0) target = $region37
    $region36: #{tpu_custom_call.1} parent=1 // pred_region
      _
    $region37: #{tpu_custom_call.1} parent=1 // pred_fallthru
      _
    // Predicated region
    $region38: #{tpu_custom_call.1} parent=1 // pred_check
      _
    $region39: #{tpu_custom_call.1} parent=1 // pred_check_branch
      %48 = sbr.rel (0) target = $region41
    $region40: #{tpu_custom_call.1} parent=1 // pred_region
      %s50 = ssub.s32 4096, 4096
      %51 = vsyncadd [#allocation6], %s50
      %s52 = sshll.u32 [#allocation5], 4
      %s53 = int_to_ptr.vmem [resolvable:$true] %s52
      %58 = dma.hbm_to_vmem [thread:$0]  %s9, 4096, %s53, [#allocation6], 256, 256, 16
    $region41: #{tpu_custom_call.1} parent=1 // pred_fallthru
      _
    // Predicated region
    $region42: #{tpu_custom_call.1} parent=1 // pred_check
      _
    $region43: #{tpu_custom_call.1} parent=1 // pred_check_branch
      %60 = sbr.rel (0) target = $region45
    $region44: #{tpu_custom_call.1} parent=1 // pred_region
      _
    $region45: #{tpu_custom_call.1} parent=1 // pred_fallthru
      _
    // Predicated region
    $region46: #{tpu_custom_call.1} parent=1 // pred_check
      _
    $region47: #{tpu_custom_call.1} parent=1 // pred_check_branch
      %62 = sbr.rel (0) target = $region49
    $region48: #{tpu_custom_call.1} parent=1 // pred_region
      %63 = dma.done [#allocation3], 4096
    $region49: #{tpu_custom_call.1} parent=1 // pred_fallthru
      _
    // Predicated region
    $region50: #{tpu_custom_call.1} parent=1 // pred_check
      _
    $region51: #{tpu_custom_call.1} parent=1 // pred_check_branch
      %65 = sbr.rel (0) target = $region53
    $region52: #{tpu_custom_call.1} parent=1 // pred_region
      %66 = dma.done [#allocation6], 4096
    $region53: #{tpu_custom_call.1} parent=1 // pred_fallthru
      _
    %v67 = vld [vmem:[%s0] sm:$0xf]
    %v68 = vld [vmem:[#allocation2] sm:$0xff]
    %v69 = vld [vmem:[#allocation2 + $0x8] sm:$0xff]
    %v70 = vld [vmem:[#allocation2 + $0x10] sm:$0xff]
    %v71 = vld [vmem:[#allocation2 + $0x18] sm:$0xff]
    %v72 = vld [vmem:[#allocation2 + $0x20] sm:$0xff]
    %v73 = vld [vmem:[#allocation2 + $0x28] sm:$0xff]
    %v74 = vld [vmem:[#allocation2 + $0x30] sm:$0xff]
    %v75 = vld [vmem:[#allocation2 + $0x38] sm:$0xff]
    %v76 = vld [vmem:[#allocation2 + $0x40] sm:$0xff]
    %v77 = vld [vmem:[#allocation2 + $0x48] sm:$0xff]
    %v78 = vld [vmem:[#allocation2 + $0x50] sm:$0xff]
    %v79 = vld [vmem:[#allocation2 + $0x58] sm:$0xff]
    %v80 = vld [vmem:[#allocation2 + $0x60] sm:$0xff]
    %v81 = vld [vmem:[#allocation2 + $0x68] sm:$0xff]
    %v82 = vld [vmem:[#allocation2 + $0x70] sm:$0xff]
    %v83 = vld [vmem:[#allocation2 + $0x78] sm:$0xff]
    %v84 = vld [vmem:[#allocation2 + $0x80] sm:$0xff]
    %v85 = vld [vmem:[#allocation2 + $0x88] sm:$0xff]
    %v86 = vld [vmem:[#allocation2 + $0x90] sm:$0xff]
    %v87 = vld [vmem:[#allocation2 + $0x98] sm:$0xff]
    %v88 = vld [vmem:[#allocation2 + $0xa0] sm:$0xff]
    %v89 = vld [vmem:[#allocation2 + $0xa8] sm:$0xff]
    %v90 = vld [vmem:[#allocation2 + $0xb0] sm:$0xff]
    %v91 = vld [vmem:[#allocation2 + $0xb8] sm:$0xff]
    %v92 = vld [vmem:[#allocation2 + $0xc0] sm:$0xff]
    %v93 = vld [vmem:[#allocation2 + $0xc8] sm:$0xff]
    %v94 = vld [vmem:[#allocation2 + $0xd0] sm:$0xff]
    %v95 = vld [vmem:[#allocation2 + $0xd8] sm:$0xff]
    %v96 = vld [vmem:[#allocation2 + $0xe0] sm:$0xff]
    %v97 = vld [vmem:[#allocation2 + $0xe8] sm:$0xff]
    %v98 = vld [vmem:[#allocation2 + $0xf0] sm:$0xff]
    %v99 = vld [vmem:[#allocation2 + $0xf8] sm:$0xff]
    %v100 = vld [vmem:[%s2] sm:$0x1]
    %v102 = vlaneseq
    %v103 = vshrl.u32 %v102, 7
    %v104 = vsub.s32 0, %v103
    %v105 = vrot.slane %v100, %v104
    %v109 = vunpack.c.l.s4 1983009808
    %v110 = vunpack.c.0.s8 %v109
    %v111 = vlaneseq
    %v112 = vshrl.u32 %v111, 7
    %v113 = vsub.s32 %v110, %v112
    %v114 = vrot.slane %v67, %v113
    %v115 = vcombine.high %v114, %v114
    %118 = vmatprep.subr.mxu0 0.0
    %119 = vmatpush1.msra.mxu0 %v83
    %120 = vmatprep.subr.mxu0 0.0
    %121 = vmatpush1.msra.mxu0 %v82
    %122 = vmatprep.subr.mxu0 0.0
    %123 = vmatpush1.msra.mxu0 %v81
    %124 = vmatprep.subr.mxu0 0.0
    %125 = vmatpush1.msra.mxu0 %v80
    %126 = vmatprep.subr.mxu0 0.0
    %127 = vmatpush1.msra.mxu0 %v79
    %128 = vmatprep.subr.mxu0 0.0
    %129 = vmatpush1.msra.mxu0 %v78
    %130 = vmatprep.subr.mxu0 0.0
    %131 = vmatpush1.msra.mxu0 %v77
    %132 = vmatprep.subr.mxu0 0.0
    %133 = vmatpush1.msra.mxu0 %v76
    %134 = vmatprep.subr.mxu0 0.0
    %135 = vmatpush1.msra.mxu0 %v75
    %136 = vmatprep.subr.mxu0 0.0
    %137 = vmatpush1.msra.mxu0 %v74
    %138 = vmatprep.subr.mxu0 0.0
    %139 = vmatpush1.msra.mxu0 %v73
    %140 = vmatprep.subr.mxu0 0.0
    %141 = vmatpush1.msra.mxu0 %v72
    %142 = vmatprep.subr.mxu0 0.0
    %143 = vmatpush1.msra.mxu0 %v71
    %144 = vmatprep.subr.mxu0 0.0
    %145 = vmatpush1.msra.mxu0 %v70
    %146 = vmatprep.subr.mxu0 0.0
    %147 = vmatpush1.msra.mxu0 %v69
    %148 = vmatprep.subr.mxu0 0.0
    %149 = vmatpush1.msra.mxu0 %v68
    %150 = vmatprep.subr.mxu0 0.0
    %151 = vmatpush2.msra.mxu0 %v99
    %152 = vmatprep.subr.mxu0 0.0
    %153 = vmatpush2.msra.mxu0 %v98
    %154 = vmatprep.subr.mxu0 0.0
    %155 = vmatpush2.msra.mxu0 %v97
    %156 = vmatprep.subr.mxu0 0.0
    %157 = vmatpush2.msra.mxu0 %v96
    %158 = vmatprep.subr.mxu0 0.0
    %159 = vmatpush2.msra.mxu0 %v95
    %160 = vmatprep.subr.mxu0 0.0
    %161 = vmatpush2.msra.mxu0 %v94
    %162 = vmatprep.subr.mxu0 0.0
    %163 = vmatpush2.msra.mxu0 %v93
    %164 = vmatprep.subr.mxu0 0.0
    %165 = vmatpush2.msra.mxu0 %v92
    %166 = vmatprep.subr.mxu0 0.0
    %167 = vmatpush2.msra.mxu0 %v91
    %168 = vmatprep.subr.mxu0 0.0
    %169 = vmatpush2.msra.mxu0 %v90
    %170 = vmatprep.subr.mxu0 0.0
    %171 = vmatpush2.msra.mxu0 %v89
    %172 = vmatprep.subr.mxu0 0.0
    %173 = vmatpush2.msra.mxu0 %v88
    %174 = vmatprep.subr.mxu0 0.0
    %175 = vmatpush2.msra.mxu0 %v87
    %176 = vmatprep.subr.mxu0 0.0
    %177 = vmatpush2.msra.mxu0 %v86
    %178 = vmatprep.subr.mxu0 0.0
    %179 = vmatpush2.msra.mxu0 %v85
    %180 = vmatprep.subr.mxu0 0.0
    %181 = vmatpush2.msra.mxu0 %v84
    %182 = vmatprep.mubr.f32.mxu0 %v115
    %183 = vmatmul.mubr.f32.gmra.mxu0 %v114
    %v184 = vpop.f32.mrf.mxu0
    %v185 = vadd.f32 %v105, %v184
    %v186 = vpop.f32.mrf.mxu0
    %187 = vdwg.mxu0
    %v188 = vmax.f32 %v185, 0.0
    %v189 = vld [vmem:[%s3] sm:$0xff]
    %v190 = vld [vmem:[%s3 + $0x8] sm:$0xff]
    %v191 = vld [vmem:[%s3 + $0x10] sm:$0xff]
    %v192 = vld [vmem:[%s3 + $0x18] sm:$0xff]
    %v193 = vld [vmem:[%s3 + $0x20] sm:$0xff]
    %v194 = vld [vmem:[%s3 + $0x28] sm:$0xff]
    %v195 = vld [vmem:[%s3 + $0x30] sm:$0xff]
    %v196 = vld [vmem:[%s3 + $0x38] sm:$0xff]
    %v197 = vld [vmem:[%s3 + $0x40] sm:$0xff]
    %v198 = vld [vmem:[%s3 + $0x48] sm:$0xff]
    %v199 = vld [vmem:[%s3 + $0x50] sm:$0xff]
    %v200 = vld [vmem:[%s3 + $0x58] sm:$0xff]
    %v201 = vld [vmem:[%s3 + $0x60] sm:$0xff]
    %v202 = vld [vmem:[%s3 + $0x68] sm:$0xff]
    %v203 = vld [vmem:[%s3 + $0x70] sm:$0xff]
    %v204 = vld [vmem:[%s3 + $0x78] sm:$0xff]
    %v205 = vld [vmem:[%s4] sm:$0x1]
    %v207 = vlaneseq
    %v208 = vshrl.u32 %v207, 7
    %v209 = vsub.s32 0, %v208
    %v210 = vrot.slane %v205, %v209
    %212 = vmatprep.subr.mxu0 0.0
    %213 = vmatpush1.msra.mxu0 %v204
    %214 = vmatprep.subr.mxu0 0.0
    %215 = vmatpush1.msra.mxu0 %v203
    %216 = vmatprep.subr.mxu0 0.0
    %217 = vmatpush1.msra.mxu0 %v202
    %218 = vmatprep.subr.mxu0 0.0
    %219 = vmatpush1.msra.mxu0 %v201
    %220 = vmatprep.subr.mxu0 0.0
    %221 = vmatpush1.msra.mxu0 %v200
    %222 = vmatprep.subr.mxu0 0.0
    %223 = vmatpush1.msra.mxu0 %v199
    %224 = vmatprep.subr.mxu0 0.0
    %225 = vmatpush1.msra.mxu0 %v198
    %226 = vmatprep.subr.mxu0 0.0
    %227 = vmatpush1.msra.mxu0 %v197
    %228 = vmatprep.subr.mxu0 0.0
    %229 = vmatpush1.msra.mxu0 %v196
    %230 = vmatprep.subr.mxu0 0.0
    %231 = vmatpush1.msra.mxu0 %v195
    %232 = vmatprep.subr.mxu0 0.0
    %233 = vmatpush1.msra.mxu0 %v194
    %234 = vmatprep.subr.mxu0 0.0
    %235 = vmatpush1.msra.mxu0 %v193
    %236 = vmatprep.subr.mxu0 0.0
    %237 = vmatpush1.msra.mxu0 %v192
    %238 = vmatprep.subr.mxu0 0.0
    %239 = vmatpush1.msra.mxu0 %v191
    %240 = vmatprep.subr.mxu0 0.0
    %241 = vmatpush1.msra.mxu0 %v190
    %242 = vmatprep.subr.mxu0 0.0
    %243 = vmatpush1.msra.mxu0 %v189
    %244 = vmatprep.subr.mxu0 0.0
    %245 = vmatpush2.msra.mxu0 0.0
    %246 = vmatprep.subr.mxu0 0.0
    %247 = vmatpush2.msra.mxu0 0.0
    %248 = vmatprep.subr.mxu0 0.0
    %249 = vmatpush2.msra.mxu0 0.0
    %250 = vmatprep.subr.mxu0 0.0
    %251 = vmatpush2.msra.mxu0 0.0
    %252 = vmatprep.subr.mxu0 0.0
    %253 = vmatpush2.msra.mxu0 0.0
    %254 = vmatprep.subr.mxu0 0.0
    %255 = vmatpush2.msra.mxu0 0.0
    %256 = vmatprep.subr.mxu0 0.0
    %257 = vmatpush2.msra.mxu0 0.0
    %258 = vmatprep.subr.mxu0 0.0
    %259 = vmatpush2.msra.mxu0 0.0
    %260 = vmatprep.subr.mxu0 0.0
    %261 = vmatpush2.msra.mxu0 0.0
    %262 = vmatprep.subr.mxu0 0.0
    %263 = vmatpush2.msra.mxu0 0.0
    %264 = vmatprep.subr.mxu0 0.0
    %265 = vmatpush2.msra.mxu0 0.0
    %266 = vmatprep.subr.mxu0 0.0
    %267 = vmatpush2.msra.mxu0 0.0
    %268 = vmatprep.subr.mxu0 0.0
    %269 = vmatpush2.msra.mxu0 0.0
    %270 = vmatprep.subr.mxu0 0.0
    %271 = vmatpush2.msra.mxu0 0.0
    %272 = vmatprep.subr.mxu0 0.0
    %273 = vmatpush2.msra.mxu0 0.0
    %274 = vmatprep.subr.mxu0 0.0
    %275 = vmatpush2.msra.mxu0 0.0
    %276 = vmatprep.mubr.f32.mxu0 0.0
    %277 = vmatmul.mubr.f32.gmra.mxu0 %v188
    %v278 = vpop.f32.mrf.mxu0
    %v279 = vadd.f32 %v210, %v278
    %v280 = vpop.f32.mrf.mxu0
    %281 = vdwg.mxu0
    %v282 = vmax.f32 %v279, 0.0
    %v283 = vld [vmem:[%s5] sm:$0xff]
    %v284 = vld [vmem:[%s5 + $0x8] sm:$0xff]
    %v285 = vld [vmem:[%s5 + $0x10] sm:$0xff]
    %v286 = vld [vmem:[%s5 + $0x18] sm:$0xff]
    %v287 = vld [vmem:[%s5 + $0x20] sm:$0xff]
    %v288 = vld [vmem:[%s5 + $0x28] sm:$0xff]
    %v289 = vld [vmem:[%s5 + $0x30] sm:$0xff]
    %v290 = vld [vmem:[%s5 + $0x38] sm:$0xff]
    %v291 = vld [vmem:[%s6] sm:$0x1]
    %v293 = vlaneseq
    %v294 = vshrl.u32 %v293, 7
    %v295 = vsub.s32 0, %v294
    %v296 = vrot.slane %v291, %v295
    %vm298 = vcmask 523264
    %v300 = vsel %vm298, %v282, 0
    %302 = vmatprep.subr.mxu0 0.0
    %303 = vmatpush1.msra.mxu0 0.0
    %304 = vmatprep.subr.mxu0 0.0
    %305 = vmatpush1.msra.mxu0 0.0
    %306 = vmatprep.subr.mxu0 0.0
    %307 = vmatpush1.msra.mxu0 0.0
    %308 = vmatprep.subr.mxu0 0.0
    %309 = vmatpush1.msra.mxu0 0.0
    %310 = vmatprep.subr.mxu0 0.0
    %311 = vmatpush1.msra.mxu0 0.0
    %312 = vmatprep.subr.mxu0 0.0
    %313 = vmatpush1.msra.mxu0 0.0
    %314 = vmatprep.subr.mxu0 0.0
    %315 = vmatpush1.msra.mxu0 0.0
    %316 = vmatprep.subr.mxu0 0.0
    %317 = vmatpush1.msra.mxu0 0.0
    %318 = vmatprep.subr.mxu0 0.0
    %319 = vmatpush1.msra.mxu0 %v290
    %320 = vmatprep.subr.mxu0 0.0
    %321 = vmatpush1.msra.mxu0 %v289
    %322 = vmatprep.subr.mxu0 0.0
    %323 = vmatpush1.msra.mxu0 %v288
    %324 = vmatprep.subr.mxu0 0.0
    %325 = vmatpush1.msra.mxu0 %v287
    %326 = vmatprep.subr.mxu0 0.0
    %327 = vmatpush1.msra.mxu0 %v286
    %328 = vmatprep.subr.mxu0 0.0
    %329 = vmatpush1.msra.mxu0 %v285
    %330 = vmatprep.subr.mxu0 0.0
    %331 = vmatpush1.msra.mxu0 %v284
    %332 = vmatprep.subr.mxu0 0.0
    %333 = vmatpush1.msra.mxu0 %v283
    %334 = vmatprep.subr.mxu0 0.0
    %335 = vmatpush2.msra.mxu0 0.0
    %336 = vmatprep.subr.mxu0 0.0
    %337 = vmatpush2.msra.mxu0 0.0
    %338 = vmatprep.subr.mxu0 0.0
    %339 = vmatpush2.msra.mxu0 0.0
    %340 = vmatprep.subr.mxu0 0.0
    %341 = vmatpush2.msra.mxu0 0.0
    %342 = vmatprep.subr.mxu0 0.0
    %343 = vmatpush2.msra.mxu0 0.0
    %344 = vmatprep.subr.mxu0 0.0
    %345 = vmatpush2.msra.mxu0 0.0
    %346 = vmatprep.subr.mxu0 0.0
    %347 = vmatpush2.msra.mxu0 0.0
    %348 = vmatprep.subr.mxu0 0.0
    %349 = vmatpush2.msra.mxu0 0.0
    %350 = vmatprep.subr.mxu0 0.0
    %351 = vmatpush2.msra.mxu0 0.0
    %352 = vmatprep.subr.mxu0 0.0
    %353 = vmatpush2.msra.mxu0 0.0
    %354 = vmatprep.subr.mxu0 0.0
    %355 = vmatpush2.msra.mxu0 0.0
    %356 = vmatprep.subr.mxu0 0.0
    %357 = vmatpush2.msra.mxu0 0.0
    %358 = vmatprep.subr.mxu0 0.0
    %359 = vmatpush2.msra.mxu0 0.0
    %360 = vmatprep.subr.mxu0 0.0
    %361 = vmatpush2.msra.mxu0 0.0
    %362 = vmatprep.subr.mxu0 0.0
    %363 = vmatpush2.msra.mxu0 0.0
    %364 = vmatprep.subr.mxu0 0.0
    %365 = vmatpush2.msra.mxu0 0.0
    %366 = vmatprep.mubr.f32.mxu0 0.0
    %367 = vmatmul.mubr.f32.gmra.mxu0 %v300
    %v368 = vpop.f32.mrf.mxu0
    %v369 = vadd.f32 %v296, %v368
    %v370 = vpop.f32.mrf.mxu0
    %371 = vdwg.mxu0
    %v372 = vmax.f32 %v369, 0.0
    %v373 = vld [vmem:[%s7] sm:$0xff]
    %v374 = vld [vmem:[%s7 + $0x8] sm:$0xff]
    %v375 = vld [vmem:[%s7 + $0x10] sm:$0xff]
    %v376 = vld [vmem:[%s7 + $0x18] sm:$0xff]
    %v377 = vld [vmem:[%s7 + $0x20] sm:$0xff]
    %v378 = vld [vmem:[%s7 + $0x28] sm:$0xff]
    %v379 = vld [vmem:[%s7 + $0x30] sm:$0xff]
    %v380 = vld [vmem:[%s7 + $0x38] sm:$0xff]
    %v381 = vld [vmem:[%s8] sm:$0x1]
    %v383 = vlaneseq
    %v384 = vshrl.u32 %v383, 7
    %v385 = vsub.s32 0, %v384
    %v386 = vrot.slane %v381, %v385
    %v389 = vsel %vm298, %v372, 0
    %391 = vmatprep.subr.mxu0 0.0
    %392 = vmatpush1.msra.mxu0 0.0
    %393 = vmatprep.subr.mxu0 0.0
    %394 = vmatpush1.msra.mxu0 0.0
    %395 = vmatprep.subr.mxu0 0.0
    %396 = vmatpush1.msra.mxu0 0.0
    %397 = vmatprep.subr.mxu0 0.0
    %398 = vmatpush1.msra.mxu0 0.0
    %399 = vmatprep.subr.mxu0 0.0
    %400 = vmatpush1.msra.mxu0 0.0
    %401 = vmatprep.subr.mxu0 0.0
    %402 = vmatpush1.msra.mxu0 0.0
    %403 = vmatprep.subr.mxu0 0.0
    %404 = vmatpush1.msra.mxu0 0.0
    %405 = vmatprep.subr.mxu0 0.0
    %406 = vmatpush1.msra.mxu0 0.0
    %407 = vmatprep.subr.mxu0 0.0
    %408 = vmatpush1.msra.mxu0 %v380
    %409 = vmatprep.subr.mxu0 0.0
    %410 = vmatpush1.msra.mxu0 %v379
    %411 = vmatprep.subr.mxu0 0.0
    %412 = vmatpush1.msra.mxu0 %v378
    %413 = vmatprep.subr.mxu0 0.0
    %414 = vmatpush1.msra.mxu0 %v377
    %415 = vmatprep.subr.mxu0 0.0
    %416 = vmatpush1.msra.mxu0 %v376
    %417 = vmatprep.subr.mxu0 0.0
    %418 = vmatpush1.msra.mxu0 %v375
    %419 = vmatprep.subr.mxu0 0.0
    %420 = vmatpush1.msra.mxu0 %v374
    %421 = vmatprep.subr.mxu0 0.0
    %422 = vmatpush1.msra.mxu0 %v373
    %423 = vmatprep.subr.mxu0 0.0
    %424 = vmatpush2.msra.mxu0 0.0
    %425 = vmatprep.subr.mxu0 0.0
    %426 = vmatpush2.msra.mxu0 0.0
    %427 = vmatprep.subr.mxu0 0.0
    %428 = vmatpush2.msra.mxu0 0.0
    %429 = vmatprep.subr.mxu0 0.0
    %430 = vmatpush2.msra.mxu0 0.0
    %431 = vmatprep.subr.mxu0 0.0
    %432 = vmatpush2.msra.mxu0 0.0
    %433 = vmatprep.subr.mxu0 0.0
    %434 = vmatpush2.msra.mxu0 0.0
    %435 = vmatprep.subr.mxu0 0.0
    %436 = vmatpush2.msra.mxu0 0.0
    %437 = vmatprep.subr.mxu0 0.0
    %438 = vmatpush2.msra.mxu0 0.0
    %439 = vmatprep.subr.mxu0 0.0
    %440 = vmatpush2.msra.mxu0 0.0
    %441 = vmatprep.subr.mxu0 0.0
    %442 = vmatpush2.msra.mxu0 0.0
    %443 = vmatprep.subr.mxu0 0.0
    %444 = vmatpush2.msra.mxu0 0.0
    %445 = vmatprep.subr.mxu0 0.0
    %446 = vmatpush2.msra.mxu0 0.0
    %447 = vmatprep.subr.mxu0 0.0
    %448 = vmatpush2.msra.mxu0 0.0
    %449 = vmatprep.subr.mxu0 0.0
    %450 = vmatpush2.msra.mxu0 0.0
    %451 = vmatprep.subr.mxu0 0.0
    %452 = vmatpush2.msra.mxu0 0.0
    %453 = vmatprep.subr.mxu0 0.0
    %454 = vmatpush2.msra.mxu0 0.0
    %455 = vmatprep.mubr.f32.mxu0 0.0
    %456 = vmatmul.mubr.f32.gmra.mxu0 %v389
    %v457 = vpop.f32.mrf.mxu0
    %v458 = vadd.f32 %v386, %v457
    %v459 = vpop.f32.mrf.mxu0
    %460 = vdwg.mxu0
    %v461 = vmax.f32 %v458, 0.0
    %v462 = vld [vmem:[#allocation5] sm:$0xff]
    %v463 = vld [vmem:[#allocation5 + $0x8] sm:$0xff]
    %v464 = vld [vmem:[#allocation5 + $0x10] sm:$0xff]
    %v465 = vld [vmem:[#allocation5 + $0x18] sm:$0xff]
    %v466 = vld [vmem:[#allocation5 + $0x20] sm:$0xff]
    %v467 = vld [vmem:[#allocation5 + $0x28] sm:$0xff]
    %v468 = vld [vmem:[#allocation5 + $0x30] sm:$0xff]
    %v469 = vld [vmem:[#allocation5 + $0x38] sm:$0xff]
    %v470 = vld [vmem:[#allocation5 + $0x40] sm:$0xff]
    %v471 = vld [vmem:[#allocation5 + $0x48] sm:$0xff]
    %v472 = vld [vmem:[#allocation5 + $0x50] sm:$0xff]
    %v473 = vld [vmem:[#allocation5 + $0x58] sm:$0xff]
    %v474 = vld [vmem:[#allocation5 + $0x60] sm:$0xff]
    %v475 = vld [vmem:[#allocation5 + $0x68] sm:$0xff]
    %v476 = vld [vmem:[#allocation5 + $0x70] sm:$0xff]
    %v477 = vld [vmem:[#allocation5 + $0x78] sm:$0xff]
    %v478 = vld [vmem:[#allocation5 + $0x80] sm:$0xff]
    %v479 = vld [vmem:[#allocation5 + $0x88] sm:$0xff]
    %v480 = vld [vmem:[#allocation5 + $0x90] sm:$0xff]
    %v481 = vld [vmem:[#allocation5 + $0x98] sm:$0xff]
    %v482 = vld [vmem:[#allocation5 + $0xa0] sm:$0xff]
    %v483 = vld [vmem:[#allocation5 + $0xa8] sm:$0xff]
    %v484 = vld [vmem:[#allocation5 + $0xb0] sm:$0xff]
    %v485 = vld [vmem:[#allocation5 + $0xb8] sm:$0xff]
    %v486 = vld [vmem:[#allocation5 + $0xc0] sm:$0xff]
    %v487 = vld [vmem:[#allocation5 + $0xc8] sm:$0xff]
    %v488 = vld [vmem:[#allocation5 + $0xd0] sm:$0xff]
    %v489 = vld [vmem:[#allocation5 + $0xd8] sm:$0xff]
    %v490 = vld [vmem:[#allocation5 + $0xe0] sm:$0xff]
    %v491 = vld [vmem:[#allocation5 + $0xe8] sm:$0xff]
    %v492 = vld [vmem:[#allocation5 + $0xf0] sm:$0xff]
    %v493 = vld [vmem:[#allocation5 + $0xf8] sm:$0xff]
    %v494 = vld [vmem:[%s10] sm:$0x3]
    %v496 = vlaneseq
    %v497 = vshrl.u32 %v496, 7
    %v498 = vsub.s32 0, %v497
    %v499 = vrot.slane %v494, %v498
    %v500 = vlaneseq
    %v501 = vshrl.u32 %v500, 7
    %v502 = vsub.s32 1, %v501
    %v503 = vrot.slane %v494, %v502
    %506 = vmatprep.subr.mxu0 %v493
    %507 = vmatpush1.msra.mxu0 %v492
    %508 = vmatprep.subr.mxu0 %v491
    %509 = vmatpush1.msra.mxu0 %v490
    %510 = vmatprep.subr.mxu0 %v489
    %511 = vmatpush1.msra.mxu0 %v488
    %512 = vmatprep.subr.mxu0 %v487
    %513 = vmatpush1.msra.mxu0 %v486
    %514 = vmatprep.subr.mxu0 %v485
    %515 = vmatpush1.msra.mxu0 %v484
    %516 = vmatprep.subr.mxu0 %v483
    %517 = vmatpush1.msra.mxu0 %v482
    %518 = vmatprep.subr.mxu0 %v481
    %519 = vmatpush1.msra.mxu0 %v480
    %520 = vmatprep.subr.mxu0 %v479
    %521 = vmatpush1.msra.mxu0 %v478
    %522 = vmatprep.subr.mxu0 %v477
    %523 = vmatpush1.msra.mxu0 %v476
    %524 = vmatprep.subr.mxu0 %v475
    %525 = vmatpush1.msra.mxu0 %v474
    %526 = vmatprep.subr.mxu0 %v473
    %527 = vmatpush1.msra.mxu0 %v472
    %528 = vmatprep.subr.mxu0 %v471
    %529 = vmatpush1.msra.mxu0 %v470
    %530 = vmatprep.subr.mxu0 %v469
    %531 = vmatpush1.msra.mxu0 %v468
    %532 = vmatprep.subr.mxu0 %v467
    %533 = vmatpush1.msra.mxu0 %v466
    %534 = vmatprep.subr.mxu0 %v465
    %535 = vmatpush1.msra.mxu0 %v464
    %536 = vmatprep.subr.mxu0 %v463
    %537 = vmatpush1.msra.mxu0 %v462
    %538 = vmatprep.subr.mxu0 0.0
    %539 = vmatpush2.msra.mxu0 0.0
    %540 = vmatprep.subr.mxu0 0.0
    %541 = vmatpush2.msra.mxu0 0.0
    %542 = vmatprep.subr.mxu0 0.0
    %543 = vmatpush2.msra.mxu0 0.0
    %544 = vmatprep.subr.mxu0 0.0
    %545 = vmatpush2.msra.mxu0 0.0
    %546 = vmatprep.subr.mxu0 0.0
    %547 = vmatpush2.msra.mxu0 0.0
    %548 = vmatprep.subr.mxu0 0.0
    %549 = vmatpush2.msra.mxu0 0.0
    %550 = vmatprep.subr.mxu0 0.0
    %551 = vmatpush2.msra.mxu0 0.0
    %552 = vmatprep.subr.mxu0 0.0
    %553 = vmatpush2.msra.mxu0 0.0
    %554 = vmatprep.subr.mxu0 0.0
    %555 = vmatpush2.msra.mxu0 0.0
    %556 = vmatprep.subr.mxu0 0.0
    %557 = vmatpush2.msra.mxu0 0.0
    %558 = vmatprep.subr.mxu0 0.0
    %559 = vmatpush2.msra.mxu0 0.0
    %560 = vmatprep.subr.mxu0 0.0
    %561 = vmatpush2.msra.mxu0 0.0
    %562 = vmatprep.subr.mxu0 0.0
    %563 = vmatpush2.msra.mxu0 0.0
    %564 = vmatprep.subr.mxu0 0.0
    %565 = vmatpush2.msra.mxu0 0.0
    %566 = vmatprep.subr.mxu0 0.0
    %567 = vmatpush2.msra.mxu0 0.0
    %568 = vmatprep.subr.mxu0 0.0
    %569 = vmatpush2.msra.mxu0 0.0
    %570 = vmatprep.mubr.f32.mxu0 0.0
    %571 = vmatmul.mubr.f32.gmra.mxu0 %v461
    %v572 = vpop.f32.mrf.mxu0
    %v573 = vadd.f32 %v499, %v572
    %v574 = vpop.f32.mrf.mxu0
    %v575 = vadd.f32 %v503, %v574
    %576 = vdwg.mxu0
    %v579 = vcombine.low %v573, %v575
    %v581 = vunpack.c.l.s4 1983009808
    %v582 = vunpack.c.0.s8 %v581
    %v583 = vlaneseq
    %v584 = vshrl.u32 %v583, 7
    %v585 = vsub.s32 %v582, %v584
    %v586 = vrot.slane %v579, %v585
    %588 = vst [vmem:[#allocation7] sm:$0xf] %v586
    // Predicated region
    $region54: #{tpu_custom_call.1} parent=1 // pred_check
      _
    $region55: #{tpu_custom_call.1} parent=1 // pred_check_branch
      %590 = sbr.rel (0) target = $region57
    $region56: #{tpu_custom_call.1} parent=1 // pred_region
      %s592 = ssub.s32 64, 64
      %593 = vsyncadd [#allocation4], %s592
      %s595 = sshll.u32 [#allocation7], 4
      %s596 = int_to_ptr.vmem [resolvable:$true] %s595
      %598 = dma.vmem_to_hbm [thread:$0]  %s596, 64, %s11, [#allocation4]
    $region57: #{tpu_custom_call.1} parent=1 // pred_fallthru
      _
    // Predicated region
    $region58: #{tpu_custom_call.1} parent=1 // pred_check
      _
    $region59: #{tpu_custom_call.1} parent=1 // pred_check_branch
      %600 = sbr.rel (0) target = $region61
    $region60: #{tpu_custom_call.1} parent=1 // pred_region
      %601 = dma.done [#allocation4], 64
    $region61: #{tpu_custom_call.1} parent=1 // pred_fallthru
      _
    %602 = vsyncpa [#allocation3], 1
    %603 = vsyncpa [#allocation6], 1
    %604 = vsyncpa [#allocation4], 1

</llo_original>
